<compile_context>
chip_gen: v7x
topology: tpu7x:2x2x1
jax: 0.10.0
libtpu: 0.0.40
codegen_flags: <defaults>
</compile_context>

<pallas_src>
import jax
import jax.numpy as jnp
from jax.experimental import pallas as pl
from jax.experimental.pallas import tpu as pltpu


def _round_up(x, m):
    return ((x + m - 1) // m) * m


def _choose_tile(B, block_batch):
    """Pick a lane-axis (batch) tile TB and padded batch B_pad."""
    b128 = _round_up(max(int(B), 1), 128)
    TB = max(128, min(_round_up(int(block_batch), 128), b128))
    # Prefer >= 2 grid steps so dimension_semantics=("parallel",) can use both
    # TensorCores on megacore parts (v7x); harmless elsewhere.
    if b128 // TB < 2 and b128 >= 256:
        TB = _round_up((b128 + 1) // 2, 128)
    B_pad = _round_up(b128, TB)
    return TB, B_pad


def coupling_fwd_kernel(xT_ref, w1T_ref, b1_ref, w2T_ref, b2_ref,
                        z_outT_ref, ldjT_ref):
    # Shapes (feature-major; batch tile TB rides the 128-lane axis):
    #   xT:   (split + cond + split, TB)  rows = [z1; y; z2]          (stream dtype)
    #   w1T:  (2H, split + cond)   fused scale|translate first layer  (stream dtype)
    #   b1:   (2H, 1) f32
    #   w2T:  (2*split, 2H)        block-diagonal second layer        (stream dtype)
    #   b2:   (2*split, 1) f32
    split = w2T_ref.shape[0] // 2
    n_in = w1T_ref.shape[1]                      # split + cond

    xT = xT_ref[...]
    z1 = xT[:split, :]                           # passthrough half (stream dtype)
    h_in = xT[:n_in, :]                          # [z1; y]
    z2 = xT[n_in:, :].astype(jnp.float32)        # (split, TB)

    # Fused first layer of BOTH nets: single K=(split+cond) matmul, single ReLU.
    # Rows 0:H -> scale net hidden, rows H:2H -> translate net hidden.
    h = jnp.dot(w1T_ref[...], h_in, preferred_element_type=jnp.float32)
    h = jnp.maximum(h + b1_ref[...], 0.0)        # (2H, TB) f32

    # Fused block-diagonal second layer: one (2*split, 2H) weight tile.
    st = jnp.dot(w2T_ref[...], h.astype(w2T_ref.dtype),
                 preferred_element_type=jnp.float32) + b2_ref[...]   # (2*split, TB)
    scale = jnp.clip(st[:split, :], -5.0, 5.0)   # f32
    translate = st[split:, :]                    # f32

    z2_new = z2 * jnp.exp(scale) + translate     # (split, TB) f32

    # Lane-dense direct row-range stores (no (input_dim, TB) concat temp).
    z_outT_ref[:split, :] = z1.astype(z_outT_ref.dtype)
    z_outT_ref[split:, :] = z2_new.astype(z_outT_ref.dtype)
    # log-det-Jacobian: cheap sublane reduce, lane-dense (1, TB) f32 output.
    ldjT_ref[...] = jnp.sum(scale, axis=0, keepdims=True).astype(ldjT_ref.dtype)


def coupling_layer_forward_fm(zT, yT, params, *, block_batch=8192,
                              stream_dtype=jnp.bfloat16):
    """Feature-major forward: zT (input_dim, B), yT (cond, B).

    Returns (z_outT (input_dim, B) in stream dtype, log_det (B,) f32).
    Use this directly for stacked coupling layers to keep a (feature, batch)
    layout end-to-end and avoid per-layer HBM transposes.
    """
    input_dim, B = zT.shape
    assert input_dim % 2 == 0, "input_dim must be even (split = input_dim // 2)"
    cond = yT.shape[0]
    split = input_dim // 2
    hidden = params["ws2"].shape[0]
    n_in = split + cond
    sdt = zT.dtype if stream_dtype is None else jnp.dtype(stream_dtype)

    # ---- restructure weights into the fused kernel layout (tiny, once per call) ----
    # Fused first layer: output columns 0:H = scale net, H:2H = translate net.
    w1T = jnp.concatenate([params["ws1"], params["wt1"]], axis=1).T.astype(sdt)      # (2H, n_in)
    b1 = jnp.concatenate([params["bs1"], params["bt1"]], axis=1).T.astype(jnp.float32)  # (2H, 1)
    # Block-diagonal second layer: rows 0:split use h[:H], rows split: use h[H:].
    zero = jnp.zeros((split, hidden), params["ws2"].dtype)
    w2T = jnp.concatenate(
        [jnp.concatenate([params["ws2"].T, zero], axis=1),
         jnp.concatenate([zero, params["wt2"].T], axis=1)], axis=0).astype(sdt)      # (2*split, 2H)
    b2 = jnp.concatenate([params["bs2"], params["bt2"]], axis=1).T.astype(jnp.float32)  # (2*split, 1)

    # ---- batch tiling: batch lives on the 128-lane axis ----
    TB, B_pad = _choose_tile(B, block_batch)
    grid = (B_pad // TB,)

    # Single streamed activation: rows [z1; y; z2] so layer-1 is one K=(split+cond) dot.
    xT = jnp.concatenate([zT[:split, :], yT, zT[split:, :]], axis=0)
    xT = jnp.pad(xT, ((0, 0), (0, B_pad - B))).astype(sdt)                            # (n_in+split, B_pad)

    def stream_spec(rows):
        return pl.BlockSpec((rows, TB), lambda i: (0, i))

    def resident_spec(a):
        return pl.BlockSpec(a.shape, lambda i: (0, 0))     # VMEM-resident across grid steps

    # ---- VMEM budget (so large TB doesn't trip the default scoped-VMEM limit) ----
    itemsize = jnp.dtype(sdt).itemsize
    vmem_est = (
        2 * ((n_in + split) + input_dim) * TB * itemsize   # double-buffered in/out streams
        + 2 * 2 * TB * 4                                   # double-buffered ldj (f32)
        + (w1T.size + w2T.size) * itemsize + (b1.size + b2.size) * 4
        + (2 * hidden) * TB * 4                            # hidden activation (f32)
        + 4 * (2 * split) * TB * 4                         # st/scale/translate/z2' temps (f32)
    )
    vmem_limit = int(min(max(2 * vmem_est, 32 * 1024 * 1024), 64 * 1024 * 1024))

    weight_bytes = (w1T.size + w2T.size) * itemsize + (b1.size + b2.size) * 4
    cost = pl.CostEstimate(
        flops=int(2 * B_pad * (n_in * 2 * hidden + 2 * hidden * 2 * split)
                  + 8 * B_pad * split),
        transcendentals=int(B_pad * split),
        bytes_accessed=int(itemsize * (xT.size + input_dim * B_pad)
                           + 4 * B_pad + weight_bytes),
    )

    z_outT, ldjT = pl.pallas_call(
        coupling_fwd_kernel,
        out_shape=(
            jax.ShapeDtypeStruct((input_dim, B_pad), sdt),
            jax.ShapeDtypeStruct((1, B_pad), jnp.float32),
        ),
        grid=grid,
        in_specs=[
            stream_spec(n_in + split),       # xT = [z1; y; z2]
            resident_spec(w1T), resident_spec(b1),
            resident_spec(w2T), resident_spec(b2),
        ],
        out_specs=(
            stream_spec(input_dim),          # z_outT
            stream_spec(1),                  # ldjT
        ),
        compiler_params=pltpu.CompilerParams(
            dimension_semantics=("parallel",),
            vmem_limit_bytes=vmem_limit),
        cost_estimate=cost,
    )(xT, w1T, b1, w2T, b2)

    return z_outT[:, :B], ldjT[0, :B]


def coupling_layer_forward(z, y, params, *, block_batch=8192,
                           stream_dtype=jnp.bfloat16):
    """(batch, feature) convenience wrapper.  Returns (z_out, log_det_jacobian).

    For stacked coupling layers, prefer coupling_layer_forward_fm and keep the
    (feature, batch) layout end-to-end; the transposes here are once-per-call
    layout plumbing.
    """
    z_outT, ldj = coupling_layer_forward_fm(
        z.T, y.T, params, block_batch=block_batch, stream_dtype=stream_dtype)
    return z_outT.T, ldj


# ----------------------------- init & reference -----------------------------

def xavier_uniform(key, shape):
    fan_in, fan_out = shape
    bound = jnp.sqrt(6.0 / (fan_in + fan_out))
    return jax.random.uniform(key, shape, jnp.float32, -bound, bound)


def init_coupling_params(key, input_dim, condition_dim, hidden=128):
    split_dim = input_dim // 2
    in_dim = split_dim + condition_dim
    ks = jax.random.split(key, 8)
    # Weights stored as (in, out); biases as (1, out).
    return {
        "ws1": xavier_uniform(ks[0], (in_dim, hidden)),
        "bs1": (jax.random.uniform(ks[1], (1, hidden), jnp.float32, -1.0, 1.0)
                / jnp.sqrt(jnp.float32(in_dim))),
        "ws2": xavier_uniform(ks[2], (hidden, split_dim)),
        "bs2": (jax.random.uniform(ks[3], (1, split_dim), jnp.float32, -1.0, 1.0)
                / jnp.sqrt(jnp.float32(hidden))),
        "wt1": xavier_uniform(ks[4], (in_dim, hidden)),
        "bt1": (jax.random.uniform(ks[5], (1, hidden), jnp.float32, -1.0, 1.0)
                / jnp.sqrt(jnp.float32(in_dim))),
        "wt2": xavier_uniform(ks[6], (hidden, split_dim)),
        "bt2": (jax.random.uniform(ks[7], (1, split_dim), jnp.float32, -1.0, 1.0)
                / jnp.sqrt(jnp.float32(hidden))),
    }


def coupling_layer_ref(z, y, params):
    """Pure-JAX f32 reference for correctness checking."""
    split = z.shape[-1] // 2
    z1, z2 = z[:, :split], z[:, split:]
    h = jnp.concatenate([z1, y], axis=-1)
    hs = jnp.maximum(h @ params["ws1"] + params["bs1"], 0.0)
    scale = jnp.clip(hs @ params["ws2"] + params["bs2"], -5.0, 5.0)
    ht = jnp.maximum(h @ params["wt1"] + params["bt1"], 0.0)
    translate = ht @ params["wt2"] + params["bt2"]
    z2_new = z2 * jnp.exp(scale) + translate
    return jnp.concatenate([z1, z2_new], axis=-1), jnp.sum(scale, axis=-1)


if __name__ == "__main__":
    key = jax.random.PRNGKey(0)
    k_param, k_z1, k_y1, k_z2, k_y2 = jax.random.split(key, 5)

    input_dim = 8          # -> split_dim = 4
    condition_dim = 4
    hidden = 128
    params = init_coupling_params(k_param, input_dim, condition_dim, hidden)

    # ---- test 1: tiny batch, f32 streaming (exact original-module semantics) ----
    B1 = 8
    z_a = jax.random.normal(k_z1, (B1, input_dim), jnp.float32)
    y_a = jax.random.normal(k_y1, (B1, condition_dim), jnp.float32)
    z_out_a, ldj_a = coupling_layer_forward(z_a, y_a, params,
                                            block_batch=128,
                                            stream_dtype=jnp.float32)
    jax.block_until_ready((z_out_a, ldj_a))
    z_ref_a, ldj_ref_a = coupling_layer_ref(z_a, y_a, params)
    assert z_out_a.shape == z_a.shape and ldj_a.shape == (B1,)
    assert jnp.allclose(z_out_a, z_ref_a, atol=1e-4, rtol=1e-4), "f32 z mismatch"
    assert jnp.allclose(ldj_a, ldj_ref_a, atol=1e-4, rtol=1e-4), "f32 log_det mismatch"

    # ---- test 2: multi-step grid with padding + bf16 fast path (default) ----
    B2 = 1000                              # B_pad=1024, TB=256 -> 4 grid steps + pad slice
    z_b = jax.random.normal(k_z2, (B2, input_dim), jnp.float32)
    y_b = jax.random.normal(k_y2, (B2, condition_dim), jnp.float32)
    z_out_b, ldj_b = coupling_layer_forward(z_b, y_b, params,
                                            block_batch=256,
                                            stream_dtype=jnp.bfloat16)
    jax.block_until_ready((z_out_b, ldj_b))
    z_ref_b, ldj_ref_b = coupling_layer_ref(z_b, y_b, params)
    assert z_out_b.shape == z_b.shape and ldj_b.shape == (B2,)
    assert jnp.allclose(z_out_b.astype(jnp.float32), z_ref_b, atol=0.1, rtol=0.05), \
        "bf16 z mismatch"
    assert jnp.allclose(ldj_b, ldj_ref_b, atol=0.1, rtol=0.05), "bf16 log_det mismatch"

    # TODO(synk): inverse() of the PyTorch module is not implemented (forward-only task).
    print("KERNEL_OK")
</pallas_src>

<mosaic_0001>
module attributes {stable_mosaic.version = 11 : i64} {
  func.func @coupling_fwd_kernel(%arg0: i32, %arg1: memref<12x128xf32, #tpu.memory_space<vmem>>, %arg2: memref<256x8xf32, #tpu.memory_space<vmem>>, %arg3: memref<256x1xf32, #tpu.memory_space<vmem>>, %arg4: memref<8x256xf32, #tpu.memory_space<vmem>>, %arg5: memref<8x1xf32, #tpu.memory_space<vmem>>, %arg6: memref<8x128xf32, #tpu.memory_space<vmem>>, %arg7: memref<1x128xf32, #tpu.memory_space<vmem>>) attributes {dimension_semantics = [#tpu.dimension_semantics<parallel>], iteration_bounds = array<i64: 1>, scalar_prefetch = 0 : i64, scratch_operands = 0 : i64, tpu.core_type = #tpu.core_type<tc>, window_params = [{transform_indices = @transform_0, window_bounds = array<i64: 12, 128>}, {pipeline_mode = #tpu.pipeline_mode<synchronous>, transform_indices = @transform_1, window_bounds = array<i64: 256, 8>}, {pipeline_mode = #tpu.pipeline_mode<synchronous>, transform_indices = @transform_2, window_bounds = array<i64: 256, 1>}, {pipeline_mode = #tpu.pipeline_mode<synchronous>, transform_indices = @transform_3, window_bounds = array<i64: 8, 256>}, {pipeline_mode = #tpu.pipeline_mode<synchronous>, transform_indices = @transform_4, window_bounds = array<i64: 8, 1>}, {transform_indices = @transform_5, window_bounds = array<i64: 8, 128>}, {transform_indices = @transform_6, window_bounds = array<i64: 1, 128>}]} {
    %c0 = arith.constant 0 : index
    %c0_0 = arith.constant 0 : index
    %0 = vector.load %arg1[%c0, %c0_0] : memref<12x128xf32, #tpu.memory_space<vmem>>, vector<12x128xf32>
    %1 = vector.extract_strided_slice %0 {offsets = [0, 0], sizes = [4, 128], strides = [1, 1]} : vector<12x128xf32> to vector<4x128xf32>
    %2 = vector.extract_strided_slice %0 {offsets = [0, 0], sizes = [8, 128], strides = [1, 1]} : vector<12x128xf32> to vector<8x128xf32>
    %3 = vector.extract_strided_slice %0 {offsets = [8, 0], sizes = [4, 128], strides = [1, 1]} : vector<12x128xf32> to vector<4x128xf32>
    %c0_1 = arith.constant 0 : index
    %c0_2 = arith.constant 0 : index
    %4 = vector.load %arg2[%c0_1, %c0_2] : memref<256x8xf32, #tpu.memory_space<vmem>>, vector<256x8xf32>
    %cst = arith.constant dense<0.000000e+00> : vector<256x128xf32>
    %5 = tpu.matmul %4, %2, %cst {dimension_numbers = #tpu.dot_dimension_numbers<[1], [0], [0], [1], [0, 0, 1, 1], [], []>} : vector<256x8xf32>, vector<8x128xf32>, vector<256x128xf32> -> vector<256x128xf32>
    %c0_3 = arith.constant 0 : index
    %c0_4 = arith.constant 0 : index
    %6 = vector.load %arg3[%c0_3, %c0_4] : memref<256x1xf32, #tpu.memory_space<vmem>>, vector<256x1xf32>
    %7 = vector.broadcast %6 : vector<256x1xf32> to vector<256x128xf32>
    %8 = arith.addf %5, %7 : vector<256x128xf32>
    %cst_5 = arith.constant 0.000000e+00 : f32
    %9 = vector.broadcast %cst_5 : f32 to vector<256x128xf32>
    %10 = arith.maximumf %8, %9 : vector<256x128xf32>
    %c0_6 = arith.constant 0 : index
    %c0_7 = arith.constant 0 : index
    %11 = vector.load %arg4[%c0_6, %c0_7] : memref<8x256xf32, #tpu.memory_space<vmem>>, vector<8x256xf32>
    %cst_8 = arith.constant dense<0.000000e+00> : vector<8x128xf32>
    %12 = tpu.matmul %11, %10, %cst_8 {dimension_numbers = #tpu.dot_dimension_numbers<[1], [0], [0], [1], [0, 0, 1, 1], [], []>} : vector<8x256xf32>, vector<256x128xf32>, vector<8x128xf32> -> vector<8x128xf32>
    %c0_9 = arith.constant 0 : index
    %c0_10 = arith.constant 0 : index
    %13 = vector.load %arg5[%c0_9, %c0_10] : memref<8x1xf32, #tpu.memory_space<vmem>>, vector<8x1xf32>
    %14 = vector.broadcast %13 : vector<8x1xf32> to vector<8x128xf32>
    %15 = arith.addf %12, %14 : vector<8x128xf32>
    %16 = vector.extract_strided_slice %15 {offsets = [0, 0], sizes = [4, 128], strides = [1, 1]} : vector<8x128xf32> to vector<4x128xf32>
    %cst_11 = arith.constant -5.000000e+00 : f32
    %cst_12 = arith.constant 5.000000e+00 : f32
    %17 = vector.broadcast %cst_11 : f32 to vector<4x128xf32>
    %18 = arith.maximumf %17, %16 : vector<4x128xf32>
    %19 = vector.broadcast %cst_12 : f32 to vector<4x128xf32>
    %20 = arith.minimumf %19, %18 : vector<4x128xf32>
    %21 = vector.extract_strided_slice %15 {offsets = [4, 0], sizes = [4, 128], strides = [1, 1]} : vector<8x128xf32> to vector<4x128xf32>
    %22 = math.exp %20 : vector<4x128xf32>
    %23 = arith.mulf %3, %22 : vector<4x128xf32>
    %24 = arith.addf %23, %21 : vector<4x128xf32>
    %c0_13 = arith.constant 0 : index
    %c0_14 = arith.constant 0 : index
    %25 = vector.load %arg6[%c0_13, %c0_14] : memref<8x128xf32, #tpu.memory_space<vmem>>, vector<4x128xf32>
    tpu.vector_store %arg6[%c0_13, %c0_14], %1 {strides = array<i32>} : memref<8x128xf32, #tpu.memory_space<vmem>>, vector<4x128xf32>,
    %c4 = arith.constant 4 : index
    %c0_15 = arith.constant 0 : index
    %26 = vector.load %arg6[%c4, %c0_15] : memref<8x128xf32, #tpu.memory_space<vmem>>, vector<4x128xf32>
    tpu.vector_store %arg6[%c4, %c0_15], %24 {strides = array<i32>} : memref<8x128xf32, #tpu.memory_space<vmem>>, vector<4x128xf32>,
    %cst_16 = arith.constant dense<0.000000e+00> : vector<128xf32>
    %27 = vector.multi_reduction <add>, %20, %cst_16 [0] : vector<4x128xf32> to vector<128xf32>
    %28 = vector.shape_cast %27 : vector<128xf32> to vector<1x128xf32>
    %c0_17 = arith.constant 0 : index
    %c0_18 = arith.constant 0 : index
    %29 = vector.load %arg7[%c0_17, %c0_18] : memref<1x128xf32, #tpu.memory_space<vmem>>, vector<1x128xf32>
    tpu.vector_store %arg7[%c0_17, %c0_18], %28 {strides = array<i32>} : memref<1x128xf32, #tpu.memory_space<vmem>>, vector<1x128xf32>,
    return
  }
  func.func @transform_0(%arg0: i32) -> (i32, i32) {
    %c0_i32 = arith.constant 0 : i32
    %c0_i32_0 = arith.constant 0 : i32
    return %c0_i32, %arg0 : i32, i32
  }
  func.func @transform_1(%arg0: i32) -> (i32, i32) {
    %c0_i32 = arith.constant 0 : i32
    %c0_i32_0 = arith.constant 0 : i32
    %c0_i32_1 = arith.constant 0 : i32
    return %c0_i32, %c0_i32_0 : i32, i32
  }
  func.func @transform_2(%arg0: i32) -> (i32, i32) {
    %c0_i32 = arith.constant 0 : i32
    %c0_i32_0 = arith.constant 0 : i32
    %c0_i32_1 = arith.constant 0 : i32
    return %c0_i32, %c0_i32_0 : i32, i32
  }
  func.func @transform_3(%arg0: i32) -> (i32, i32) {
    %c0_i32 = arith.constant 0 : i32
    %c0_i32_0 = arith.constant 0 : i32
    %c0_i32_1 = arith.constant 0 : i32
    return %c0_i32, %c0_i32_0 : i32, i32
  }
  func.func @transform_4(%arg0: i32) -> (i32, i32) {
    %c0_i32 = arith.constant 0 : i32
    %c0_i32_0 = arith.constant 0 : i32
    %c0_i32_1 = arith.constant 0 : i32
    return %c0_i32, %c0_i32_0 : i32, i32
  }
  func.func @transform_5(%arg0: i32) -> (i32, i32) {
    %c0_i32 = arith.constant 0 : i32
    %c0_i32_0 = arith.constant 0 : i32
    return %c0_i32, %arg0 : i32, i32
  }
  func.func @transform_6(%arg0: i32) -> (i32, i32) {
    %c0_i32 = arith.constant 0 : i32
    %c0_i32_0 = arith.constant 0 : i32
    return %c0_i32, %arg0 : i32, i32
  }
}

</mosaic_0001>

<llo_original>
// kernel: tpu_custom_call.1
$region0: #{tpu_custom_call.1}
  #allocation0 [shape = 'u32[]', space=smem, size = 0x4, offset = 0x4, fixed_abs, tag = 'smem constant byte address 0x4 - core index']
  #allocation1 [shape = 'u32[144,128]{1,0:T(1,128)}', space=vmem, size = 0x12000, scoped, tag = 'internal scratch']
  %s0 = inlined_call_operand.vmem [shape: f32[12,128], index: 0, kind: input, shape index: {}]
  %s1 = inlined_call_operand.vmem [shape: f32[256,8], index: 1, kind: input, shape index: {}]
  %s2 = inlined_call_operand.vmem [shape: f32[256,1], index: 2, kind: input, shape index: {}]
  %s3 = inlined_call_operand.vmem [shape: f32[8,256], index: 3, kind: input, shape index: {}]
  %s4 = inlined_call_operand.vmem [shape: f32[8,1], index: 4, kind: input, shape index: {}]
  %s5 = inlined_call_operand.hbm [shape: f32[8,128], index: 5, kind: output, shape index: {0}]
  %s6 = inlined_call_operand.hbm [shape: f32[1,128], index: 6, kind: output, shape index: {1}]
  %7 = xla_tuple %s5, %s6
  %s8 = sld [smem:[#allocation0]]
  $region38: #{tpu_custom_call.1} parent=0
    _
  %s10 = ssub.s32 1, %s8
  %s11 = scalar_select 0, %s10, %s8
  $region1: #{tpu_custom_call.1} parent=0
    #allocation2 [shape = 'u8[4096]{0}', space=vmem, size = 0x1000, scoped, tag = 'output window, operand 0, single buffered']
    #allocation3 [shape = 's32[1]{0}', space=sflag, size = 0x4, scoped, tag = 'scoped memory for tpu_custom_call.1']
    #allocation4 [shape = 'u8[512]{0}', space=vmem, size = 0x400, scoped, tag = 'output window, operand 1, single buffered']
    #allocation5 [shape = 's32[1]{0}', space=sflag, size = 0x4, scoped, tag = 'scoped memory for tpu_custom_call.1']
    %12 = vsyncpa [#allocation3], 0
    %13 = vsyncpa [#allocation5], 0
    // Predicated region
    $region2: #{tpu_custom_call.1} parent=1 // pred_check
      _
    $region3: #{tpu_custom_call.1} parent=1 // pred_check_branch
      %15 = sbr.rel (0) target = $region5
    $region4: #{tpu_custom_call.1} parent=1 // pred_region
      _
    $region5: #{tpu_custom_call.1} parent=1 // pred_fallthru
      _
    // Predicated region
    $region6: #{tpu_custom_call.1} parent=1 // pred_check
      _
    $region7: #{tpu_custom_call.1} parent=1 // pred_check_branch
      %17 = sbr.rel (0) target = $region9
    $region8: #{tpu_custom_call.1} parent=1 // pred_region
      _
    $region9: #{tpu_custom_call.1} parent=1 // pred_fallthru
      _
    // Predicated region
    $region10: #{tpu_custom_call.1} parent=1 // pred_check
      _
    $region11: #{tpu_custom_call.1} parent=1 // pred_check_branch
      %19 = sbr.rel (0) target = $region13
    $region12: #{tpu_custom_call.1} parent=1 // pred_region
      _
    $region13: #{tpu_custom_call.1} parent=1 // pred_fallthru
      _
    // Predicated region
    $region14: #{tpu_custom_call.1} parent=1 // pred_check
      _
    $region15: #{tpu_custom_call.1} parent=1 // pred_check_branch
      %21 = sbr.rel (0) target = $region17
    $region16: #{tpu_custom_call.1} parent=1 // pred_region
      _
    $region17: #{tpu_custom_call.1} parent=1 // pred_fallthru
      _
    // Predicated region
    $region18: #{tpu_custom_call.1} parent=1 // pred_check
      _
    $region19: #{tpu_custom_call.1} parent=1 // pred_check_branch
      %23 = sbr.rel (0) target = $region21
    $region20: #{tpu_custom_call.1} parent=1 // pred_region
      _
    $region21: #{tpu_custom_call.1} parent=1 // pred_fallthru
      _
    %v24 = vld [vmem:[%s0] sm:$0xff]
    %v25 = vld [vmem:[%s0 + $0x8] sm:$0xf]
    %v26 = vld [vmem:[%s1] sm:$0xff]
    %v27 = vld [vmem:[%s1 + $0x8] sm:$0xff]
    %v28 = vld [vmem:[%s1 + $0x10] sm:$0xff]
    %v29 = vld [vmem:[%s1 + $0x18] sm:$0xff]
    %v30 = vld [vmem:[%s1 + $0x20] sm:$0xff]
    %v31 = vld [vmem:[%s1 + $0x28] sm:$0xff]
    %v32 = vld [vmem:[%s1 + $0x30] sm:$0xff]
    %v33 = vld [vmem:[%s1 + $0x38] sm:$0xff]
    %v34 = vld [vmem:[%s1 + $0x40] sm:$0xff]
    %v35 = vld [vmem:[%s1 + $0x48] sm:$0xff]
    %v36 = vld [vmem:[%s1 + $0x50] sm:$0xff]
    %v37 = vld [vmem:[%s1 + $0x58] sm:$0xff]
    %v38 = vld [vmem:[%s1 + $0x60] sm:$0xff]
    %v39 = vld [vmem:[%s1 + $0x68] sm:$0xff]
    %v40 = vld [vmem:[%s1 + $0x70] sm:$0xff]
    %v41 = vld [vmem:[%s1 + $0x78] sm:$0xff]
    %v42 = vld [vmem:[%s1 + $0x80] sm:$0xff]
    %v43 = vld [vmem:[%s1 + $0x88] sm:$0xff]
    %v44 = vld [vmem:[%s1 + $0x90] sm:$0xff]
    %v45 = vld [vmem:[%s1 + $0x98] sm:$0xff]
    %v46 = vld [vmem:[%s1 + $0xa0] sm:$0xff]
    %v47 = vld [vmem:[%s1 + $0xa8] sm:$0xff]
    %v48 = vld [vmem:[%s1 + $0xb0] sm:$0xff]
    %v49 = vld [vmem:[%s1 + $0xb8] sm:$0xff]
    %v50 = vld [vmem:[%s1 + $0xc0] sm:$0xff]
    %v51 = vld [vmem:[%s1 + $0xc8] sm:$0xff]
    %v52 = vld [vmem:[%s1 + $0xd0] sm:$0xff]
    %v53 = vld [vmem:[%s1 + $0xd8] sm:$0xff]
    %v54 = vld [vmem:[%s1 + $0xe0] sm:$0xff]
    %v55 = vld [vmem:[%s1 + $0xe8] sm:$0xff]
    %v56 = vld [vmem:[%s1 + $0xf0] sm:$0xff]
    %v57 = vld [vmem:[%s1 + $0xf8] sm:$0xff]
    %v58 = vld [vmem:[%s2] sm:$0xff]
    %v59 = vld [vmem:[%s2 + $0x8] sm:$0xff]
    %v60 = vld [vmem:[%s2 + $0x10] sm:$0xff]
    %v61 = vld [vmem:[%s2 + $0x18] sm:$0xff]
    %v62 = vld [vmem:[%s2 + $0x20] sm:$0xff]
    %v63 = vld [vmem:[%s2 + $0x28] sm:$0xff]
    %v64 = vld [vmem:[%s2 + $0x30] sm:$0xff]
    %v65 = vld [vmem:[%s2 + $0x38] sm:$0xff]
    %v66 = vld [vmem:[%s2 + $0x40] sm:$0xff]
    %v67 = vld [vmem:[%s2 + $0x48] sm:$0xff]
    %v68 = vld [vmem:[%s2 + $0x50] sm:$0xff]
    %v69 = vld [vmem:[%s2 + $0x58] sm:$0xff]
    %v70 = vld [vmem:[%s2 + $0x60] sm:$0xff]
    %v71 = vld [vmem:[%s2 + $0x68] sm:$0xff]
    %v72 = vld [vmem:[%s2 + $0x70] sm:$0xff]
    %v73 = vld [vmem:[%s2 + $0x78] sm:$0xff]
    %v74 = vld [vmem:[%s2 + $0x80] sm:$0xff]
    %v75 = vld [vmem:[%s2 + $0x88] sm:$0xff]
    %v76 = vld [vmem:[%s2 + $0x90] sm:$0xff]
    %v77 = vld [vmem:[%s2 + $0x98] sm:$0xff]
    %v78 = vld [vmem:[%s2 + $0xa0] sm:$0xff]
    %v79 = vld [vmem:[%s2 + $0xa8] sm:$0xff]
    %v80 = vld [vmem:[%s2 + $0xb0] sm:$0xff]
    %v81 = vld [vmem:[%s2 + $0xb8] sm:$0xff]
    %v82 = vld [vmem:[%s2 + $0xc0] sm:$0xff]
    %v83 = vld [vmem:[%s2 + $0xc8] sm:$0xff]
    %v84 = vld [vmem:[%s2 + $0xd0] sm:$0xff]
    %v85 = vld [vmem:[%s2 + $0xd8] sm:$0xff]
    %v86 = vld [vmem:[%s2 + $0xe0] sm:$0xff]
    %v87 = vld [vmem:[%s2 + $0xe8] sm:$0xff]
    %v88 = vld [vmem:[%s2 + $0xf0] sm:$0xff]
    %v89 = vld [vmem:[%s2 + $0xf8] sm:$0xff]
    %91 = vset.pattern.permute.xlu0 0
    %92 = vperm.xlu0 %91, %v58
    %v93 = vpop.permute.xlu0 %92
    %96 = vset.pattern.permute.xlu0 0
    %97 = vperm.xlu0 %96, %v59
    %v98 = vpop.permute.xlu0 %97
    %101 = vset.pattern.permute.xlu0 0
    %102 = vperm.xlu0 %101, %v60
    %v103 = vpop.permute.xlu0 %102
    %106 = vset.pattern.permute.xlu0 0
    %107 = vperm.xlu0 %106, %v61
    %v108 = vpop.permute.xlu0 %107
    %111 = vset.pattern.permute.xlu0 0
    %112 = vperm.xlu0 %111, %v62
    %v113 = vpop.permute.xlu0 %112
    %116 = vset.pattern.permute.xlu0 0
    %117 = vperm.xlu0 %116, %v63
    %v118 = vpop.permute.xlu0 %117
    %121 = vset.pattern.permute.xlu0 0
    %122 = vperm.xlu0 %121, %v64
    %v123 = vpop.permute.xlu0 %122
    %126 = vset.pattern.permute.xlu0 0
    %127 = vperm.xlu0 %126, %v65
    %v128 = vpop.permute.xlu0 %127
    %131 = vset.pattern.permute.xlu0 0
    %132 = vperm.xlu0 %131, %v66
    %v133 = vpop.permute.xlu0 %132
    %136 = vset.pattern.permute.xlu0 0
    %137 = vperm.xlu0 %136, %v67
    %v138 = vpop.permute.xlu0 %137
    %141 = vset.pattern.permute.xlu0 0
    %142 = vperm.xlu0 %141, %v68
    %v143 = vpop.permute.xlu0 %142
    %146 = vset.pattern.permute.xlu0 0
    %147 = vperm.xlu0 %146, %v69
    %v148 = vpop.permute.xlu0 %147
    %151 = vset.pattern.permute.xlu0 0
    %152 = vperm.xlu0 %151, %v70
    %v153 = vpop.permute.xlu0 %152
    %156 = vset.pattern.permute.xlu0 0
    %157 = vperm.xlu0 %156, %v71
    %v158 = vpop.permute.xlu0 %157
    %161 = vset.pattern.permute.xlu0 0
    %162 = vperm.xlu0 %161, %v72
    %v163 = vpop.permute.xlu0 %162
    %166 = vset.pattern.permute.xlu0 0
    %167 = vperm.xlu0 %166, %v73
    %v168 = vpop.permute.xlu0 %167
    %171 = vset.pattern.permute.xlu0 0
    %172 = vperm.xlu0 %171, %v74
    %v173 = vpop.permute.xlu0 %172
    %176 = vset.pattern.permute.xlu0 0
    %177 = vperm.xlu0 %176, %v75
    %v178 = vpop.permute.xlu0 %177
    %181 = vset.pattern.permute.xlu0 0
    %182 = vperm.xlu0 %181, %v76
    %v183 = vpop.permute.xlu0 %182
    %186 = vset.pattern.permute.xlu0 0
    %187 = vperm.xlu0 %186, %v77
    %v188 = vpop.permute.xlu0 %187
    %191 = vset.pattern.permute.xlu0 0
    %192 = vperm.xlu0 %191, %v78
    %v193 = vpop.permute.xlu0 %192
    %196 = vset.pattern.permute.xlu0 0
    %197 = vperm.xlu0 %196, %v79
    %v198 = vpop.permute.xlu0 %197
    %201 = vset.pattern.permute.xlu0 0
    %202 = vperm.xlu0 %201, %v80
    %v203 = vpop.permute.xlu0 %202
    %206 = vset.pattern.permute.xlu0 0
    %207 = vperm.xlu0 %206, %v81
    %v208 = vpop.permute.xlu0 %207
    %211 = vset.pattern.permute.xlu0 0
    %212 = vperm.xlu0 %211, %v82
    %v213 = vpop.permute.xlu0 %212
    %216 = vset.pattern.permute.xlu0 0
    %217 = vperm.xlu0 %216, %v83
    %v218 = vpop.permute.xlu0 %217
    %221 = vset.pattern.permute.xlu0 0
    %222 = vperm.xlu0 %221, %v84
    %v223 = vpop.permute.xlu0 %222
    %226 = vset.pattern.permute.xlu0 0
    %227 = vperm.xlu0 %226, %v85
    %v228 = vpop.permute.xlu0 %227
    %231 = vset.pattern.permute.xlu0 0
    %232 = vperm.xlu0 %231, %v86
    %v233 = vpop.permute.xlu0 %232
    %236 = vset.pattern.permute.xlu0 0
    %237 = vperm.xlu0 %236, %v87
    %v238 = vpop.permute.xlu0 %237
    %241 = vset.pattern.permute.xlu0 0
    %242 = vperm.xlu0 %241, %v88
    %v243 = vpop.permute.xlu0 %242
    %246 = vset.pattern.permute.xlu0 0
    %247 = vperm.xlu0 %246, %v89
    %v248 = vpop.permute.xlu0 %247
    %vm250 = vcmask 64512
    %v252 = vsel %vm250, %v26, 0
    %v255 = vsel %vm250, %v27, 0
    %v258 = vsel %vm250, %v28, 0
    %v261 = vsel %vm250, %v29, 0
    %v264 = vsel %vm250, %v30, 0
    %v267 = vsel %vm250, %v31, 0
    %v270 = vsel %vm250, %v32, 0
    %v273 = vsel %vm250, %v33, 0
    %v276 = vsel %vm250, %v34, 0
    %v279 = vsel %vm250, %v35, 0
    %v282 = vsel %vm250, %v36, 0
    %v285 = vsel %vm250, %v37, 0
    %v288 = vsel %vm250, %v38, 0
    %v291 = vsel %vm250, %v39, 0
    %v294 = vsel %vm250, %v40, 0
    %v297 = vsel %vm250, %v41, 0
    %v300 = vsel %vm250, %v42, 0
    %v303 = vsel %vm250, %v43, 0
    %v306 = vsel %vm250, %v44, 0
    %v309 = vsel %vm250, %v45, 0
    %v312 = vsel %vm250, %v46, 0
    %v315 = vsel %vm250, %v47, 0
    %v318 = vsel %vm250, %v48, 0
    %v321 = vsel %vm250, %v49, 0
    %v324 = vsel %vm250, %v50, 0
    %v327 = vsel %vm250, %v51, 0
    %v330 = vsel %vm250, %v52, 0
    %v333 = vsel %vm250, %v53, 0
    %v336 = vsel %vm250, %v54, 0
    %v339 = vsel %vm250, %v55, 0
    %v342 = vsel %vm250, %v56, 0
    %v345 = vsel %vm250, %v57, 0
    %347 = vmatprep.subr.mxu0 0.0
    %348 = vmatpush1.msra.mxu0 %v24
    %349 = vmatprep.subr.mxu0 0.0
    %350 = vmatpush1.msra.mxu0 0.0
    %351 = vmatprep.subr.mxu0 0.0
    %352 = vmatpush1.msra.mxu0 0.0
    %353 = vmatprep.subr.mxu0 0.0
    %354 = vmatpush1.msra.mxu0 0.0
    %355 = vmatprep.subr.mxu0 0.0
    %356 = vmatpush1.msra.mxu0 0.0
    %357 = vmatprep.subr.mxu0 0.0
    %358 = vmatpush1.msra.mxu0 0.0
    %359 = vmatprep.subr.mxu0 0.0
    %360 = vmatpush1.msra.mxu0 0.0
    %361 = vmatprep.subr.mxu0 0.0
    %362 = vmatpush1.msra.mxu0 0.0
    %363 = vmatprep.subr.mxu0 0.0
    %364 = vmatpush1.msra.mxu0 0.0
    %365 = vmatprep.subr.mxu0 0.0
    %366 = vmatpush1.msra.mxu0 0.0
    %367 = vmatprep.subr.mxu0 0.0
    %368 = vmatpush1.msra.mxu0 0.0
    %369 = vmatprep.subr.mxu0 0.0
    %370 = vmatpush1.msra.mxu0 0.0
    %371 = vmatprep.subr.mxu0 0.0
    %372 = vmatpush1.msra.mxu0 0.0
    %373 = vmatprep.subr.mxu0 0.0
    %374 = vmatpush1.msra.mxu0 0.0
    %375 = vmatprep.subr.mxu0 0.0
    %376 = vmatpush1.msra.mxu0 0.0
    %377 = vmatprep.subr.mxu0 0.0
    %378 = vmatpush1.msra.mxu0 0.0
    %379 = vmatprep.subr.mxu0 0.0
    %380 = vmatpush1.msra.mxu0 0.0
    %381 = vmatprep.subr.mxu0 0.0
    %382 = vmatpush1.msra.mxu0 0.0
    %383 = vmatprep.subr.mxu0 0.0
    %384 = vmatpush1.msra.mxu0 0.0
    %385 = vmatprep.subr.mxu0 0.0
    %386 = vmatpush1.msra.mxu0 0.0
    %387 = vmatprep.subr.mxu0 0.0
    %388 = vmatpush1.msra.mxu0 0.0
    %389 = vmatprep.subr.mxu0 0.0
    %390 = vmatpush1.msra.mxu0 0.0
    %391 = vmatprep.subr.mxu0 0.0
    %392 = vmatpush1.msra.mxu0 0.0
    %393 = vmatprep.subr.mxu0 0.0
    %394 = vmatpush1.msra.mxu0 0.0
    %395 = vmatprep.subr.mxu0 0.0
    %396 = vmatpush1.msra.mxu0 0.0
    %397 = vmatprep.subr.mxu0 0.0
    %398 = vmatpush1.msra.mxu0 0.0
    %399 = vmatprep.subr.mxu0 0.0
    %400 = vmatpush1.msra.mxu0 0.0
    %401 = vmatprep.subr.mxu0 0.0
    %402 = vmatpush1.msra.mxu0 0.0
    %403 = vmatprep.subr.mxu0 0.0
    %404 = vmatpush1.msra.mxu0 0.0
    %405 = vmatprep.subr.mxu0 0.0
    %406 = vmatpush1.msra.mxu0 0.0
    %407 = vmatprep.subr.mxu0 0.0
    %408 = vmatpush1.msra.mxu0 0.0
    %409 = vmatprep.subr.mxu0 0.0
    %410 = vmatpush1.msra.mxu0 0.0
    %411 = vmatprep.mubr.f32.mxu0 0.0
    %412 = vmatmul.mubr.f32.gmra.mrb[0].mxu0 %v252
    %v413 = vpop.f32.mrb[0].mxu0
    %v414 = vadd.f32 %v93, %v413
    %v415 = vpop.f32.mrb[0].mxu0
    %416 = vmatprep.mubr.f32.mxu0 0.0
    %417 = vmatmul.mubr.f32.gmra.mrb[0].mxu0 %v255
    %v418 = vpop.f32.mrb[0].mxu0
    %v419 = vadd.f32 %v98, %v418
    %v420 = vpop.f32.mrb[0].mxu0
    %421 = vmatprep.mubr.f32.mxu0 0.0
    %422 = vmatmul.mubr.f32.gmra.mrb[0].mxu0 %v258
    %v423 = vpop.f32.mrb[0].mxu0
    %v424 = vadd.f32 %v103, %v423
    %v425 = vpop.f32.mrb[0].mxu0
    %426 = vmatprep.mubr.f32.mxu0 0.0
    %427 = vmatmul.mubr.f32.gmra.mrb[0].mxu0 %v261
    %v428 = vpop.f32.mrb[0].mxu0
    %v429 = vadd.f32 %v108, %v428
    %v430 = vpop.f32.mrb[0].mxu0
    %431 = vmatprep.mubr.f32.mxu0 0.0
    %432 = vmatmul.mubr.f32.gmra.mrb[0].mxu0 %v264
    %v433 = vpop.f32.mrb[0].mxu0
    %v434 = vadd.f32 %v113, %v433
    %v435 = vpop.f32.mrb[0].mxu0
    %436 = vmatprep.mubr.f32.mxu0 0.0
    %437 = vmatmul.mubr.f32.gmra.mrb[0].mxu0 %v267
    %v438 = vpop.f32.mrb[0].mxu0
    %v439 = vadd.f32 %v118, %v438
    %v440 = vpop.f32.mrb[0].mxu0
    %441 = vmatprep.mubr.f32.mxu0 0.0
    %442 = vmatmul.mubr.f32.gmra.mrb[0].mxu0 %v270
    %v443 = vpop.f32.mrb[0].mxu0
    %v444 = vadd.f32 %v123, %v443
    %v445 = vpop.f32.mrb[0].mxu0
    %446 = vmatprep.mubr.f32.mxu0 0.0
    %447 = vmatmul.mubr.f32.gmra.mrb[0].mxu0 %v273
    %v448 = vpop.f32.mrb[0].mxu0
    %v449 = vadd.f32 %v128, %v448
    %v450 = vpop.f32.mrb[0].mxu0
    %451 = vmatprep.mubr.f32.mxu0 0.0
    %452 = vmatmul.mubr.f32.gmra.mrb[0].mxu0 %v276
    %v453 = vpop.f32.mrb[0].mxu0
    %v454 = vadd.f32 %v133, %v453
    %v455 = vpop.f32.mrb[0].mxu0
    %456 = vmatprep.mubr.f32.mxu0 0.0
    %457 = vmatmul.mubr.f32.gmra.mrb[0].mxu0 %v279
    %v458 = vpop.f32.mrb[0].mxu0
    %v459 = vadd.f32 %v138, %v458
    %v460 = vpop.f32.mrb[0].mxu0
    %461 = vmatprep.mubr.f32.mxu0 0.0
    %462 = vmatmul.mubr.f32.gmra.mrb[0].mxu0 %v282
    %v463 = vpop.f32.mrb[0].mxu0
    %v464 = vadd.f32 %v143, %v463
    %v465 = vpop.f32.mrb[0].mxu0
    %466 = vmatprep.mubr.f32.mxu0 0.0
    %467 = vmatmul.mubr.f32.gmra.mrb[0].mxu0 %v285
    %v468 = vpop.f32.mrb[0].mxu0
    %v469 = vadd.f32 %v148, %v468
    %v470 = vpop.f32.mrb[0].mxu0
    %471 = vmatprep.mubr.f32.mxu0 0.0
    %472 = vmatmul.mubr.f32.gmra.mrb[0].mxu0 %v288
    %v473 = vpop.f32.mrb[0].mxu0
    %v474 = vadd.f32 %v153, %v473
    %v475 = vpop.f32.mrb[0].mxu0
    %476 = vmatprep.mubr.f32.mxu0 0.0
    %477 = vmatmul.mubr.f32.gmra.mrb[0].mxu0 %v291
    %v478 = vpop.f32.mrb[0].mxu0
    %v479 = vadd.f32 %v158, %v478
    %v480 = vpop.f32.mrb[0].mxu0
    %481 = vmatprep.mubr.f32.mxu0 0.0
    %482 = vmatmul.mubr.f32.gmra.mrb[0].mxu0 %v294
    %v483 = vpop.f32.mrb[0].mxu0
    %v484 = vadd.f32 %v163, %v483
    %v485 = vpop.f32.mrb[0].mxu0
    %486 = vmatprep.mubr.f32.mxu0 0.0
    %487 = vmatmul.mubr.f32.gmra.mrb[0].mxu0 %v297
    %v488 = vpop.f32.mrb[0].mxu0
    %v489 = vadd.f32 %v168, %v488
    %v490 = vpop.f32.mrb[0].mxu0
    %491 = vmatprep.mubr.f32.mxu0 0.0
    %492 = vmatmul.mubr.f32.gmra.mrb[0].mxu0 %v300
    %v493 = vpop.f32.mrb[0].mxu0
    %v494 = vadd.f32 %v173, %v493
    %v495 = vpop.f32.mrb[0].mxu0
    %496 = vmatprep.mubr.f32.mxu0 0.0
    %497 = vmatmul.mubr.f32.gmra.mrb[0].mxu0 %v303
    %v498 = vpop.f32.mrb[0].mxu0
    %v499 = vadd.f32 %v178, %v498
    %v500 = vpop.f32.mrb[0].mxu0
    %501 = vmatprep.mubr.f32.mxu0 0.0
    %502 = vmatmul.mubr.f32.gmra.mrb[0].mxu0 %v306
    %v503 = vpop.f32.mrb[0].mxu0
    %v504 = vadd.f32 %v183, %v503
    %v505 = vpop.f32.mrb[0].mxu0
    %506 = vmatprep.mubr.f32.mxu0 0.0
    %507 = vmatmul.mubr.f32.gmra.mrb[0].mxu0 %v309
    %v508 = vpop.f32.mrb[0].mxu0
    %v509 = vadd.f32 %v188, %v508
    %v510 = vpop.f32.mrb[0].mxu0
    %511 = vmatprep.mubr.f32.mxu0 0.0
    %512 = vmatmul.mubr.f32.gmra.mrb[0].mxu0 %v312
    %v513 = vpop.f32.mrb[0].mxu0
    %v514 = vadd.f32 %v193, %v513
    %v515 = vpop.f32.mrb[0].mxu0
    %516 = vmatprep.mubr.f32.mxu0 0.0
    %517 = vmatmul.mubr.f32.gmra.mrb[0].mxu0 %v315
    %v518 = vpop.f32.mrb[0].mxu0
    %v519 = vadd.f32 %v198, %v518
    %v520 = vpop.f32.mrb[0].mxu0
    %521 = vmatprep.mubr.f32.mxu0 0.0
    %522 = vmatmul.mubr.f32.gmra.mrb[0].mxu0 %v318
    %v523 = vpop.f32.mrb[0].mxu0
    %v524 = vadd.f32 %v203, %v523
    %v525 = vpop.f32.mrb[0].mxu0
    %526 = vmatprep.mubr.f32.mxu0 0.0
    %527 = vmatmul.mubr.f32.gmra.mrb[0].mxu0 %v321
    %v528 = vpop.f32.mrb[0].mxu0
    %v529 = vadd.f32 %v208, %v528
    %v530 = vpop.f32.mrb[0].mxu0
    %531 = vmatprep.mubr.f32.mxu0 0.0
    %532 = vmatmul.mubr.f32.gmra.mrb[0].mxu0 %v324
    %v533 = vpop.f32.mrb[0].mxu0
    %v534 = vadd.f32 %v213, %v533
    %v535 = vpop.f32.mrb[0].mxu0
    %536 = vmatprep.mubr.f32.mxu0 0.0
    %537 = vmatmul.mubr.f32.gmra.mrb[0].mxu0 %v327
    %v538 = vpop.f32.mrb[0].mxu0
    %v539 = vadd.f32 %v218, %v538
    %v540 = vpop.f32.mrb[0].mxu0
    %541 = vmatprep.mubr.f32.mxu0 0.0
    %542 = vmatmul.mubr.f32.gmra.mrb[0].mxu0 %v330
    %v543 = vpop.f32.mrb[0].mxu0
    %v544 = vadd.f32 %v223, %v543
    %v545 = vpop.f32.mrb[0].mxu0
    %546 = vmatprep.mubr.f32.mxu0 0.0
    %547 = vmatmul.mubr.f32.gmra.mrb[0].mxu0 %v333
    %v548 = vpop.f32.mrb[0].mxu0
    %v549 = vadd.f32 %v228, %v548
    %v550 = vpop.f32.mrb[0].mxu0
    %551 = vmatprep.mubr.f32.mxu0 0.0
    %552 = vmatmul.mubr.f32.gmra.mrb[0].mxu0 %v336
    %v553 = vpop.f32.mrb[0].mxu0
    %v554 = vadd.f32 %v233, %v553
    %v555 = vpop.f32.mrb[0].mxu0
    %556 = vmatprep.mubr.f32.mxu0 0.0
    %557 = vmatmul.mubr.f32.gmra.mrb[0].mxu0 %v339
    %v558 = vpop.f32.mrb[0].mxu0
    %v559 = vadd.f32 %v238, %v558
    %v560 = vpop.f32.mrb[0].mxu0
    %561 = vmatprep.mubr.f32.mxu0 0.0
    %562 = vmatmul.mubr.f32.gmra.mrb[0].mxu0 %v342
    %v563 = vpop.f32.mrb[0].mxu0
    %v564 = vadd.f32 %v243, %v563
    %v565 = vpop.f32.mrb[0].mxu0
    %566 = vmatprep.mubr.f32.mxu0 0.0
    %567 = vmatmul.mubr.f32.gmra.mrb[0].mxu0 %v345
    %v568 = vpop.f32.mrb[0].mxu0
    %v569 = vadd.f32 %v248, %v568
    %v570 = vpop.f32.mrb[0].mxu0
    %571 = vdwg.mxu0
    %v572 = vmax.f32 %v414, 0.0
    %v573 = vmax.f32 %v419, 0.0
    %v574 = vmax.f32 %v424, 0.0
    %v575 = vmax.f32 %v429, 0.0
    %v576 = vmax.f32 %v434, 0.0
    %v577 = vmax.f32 %v439, 0.0
    %v578 = vmax.f32 %v444, 0.0
    %v579 = vmax.f32 %v449, 0.0
    %v580 = vmax.f32 %v454, 0.0
    %v581 = vmax.f32 %v459, 0.0
    %v582 = vmax.f32 %v464, 0.0
    %v583 = vmax.f32 %v469, 0.0
    %v584 = vmax.f32 %v474, 0.0
    %v585 = vmax.f32 %v479, 0.0
    %v586 = vmax.f32 %v484, 0.0
    %v587 = vmax.f32 %v489, 0.0
    %v588 = vmax.f32 %v494, 0.0
    %v589 = vmax.f32 %v499, 0.0
    %v590 = vmax.f32 %v504, 0.0
    %v591 = vmax.f32 %v509, 0.0
    %v592 = vmax.f32 %v514, 0.0
    %v593 = vmax.f32 %v519, 0.0
    %v594 = vmax.f32 %v524, 0.0
    %v595 = vmax.f32 %v529, 0.0
    %v596 = vmax.f32 %v534, 0.0
    %v597 = vmax.f32 %v539, 0.0
    %v598 = vmax.f32 %v544, 0.0
    %v599 = vmax.f32 %v549, 0.0
    %v600 = vmax.f32 %v554, 0.0
    %v601 = vmax.f32 %v559, 0.0
    %v602 = vmax.f32 %v564, 0.0
    %v603 = vmax.f32 %v569, 0.0
    %v604 = vld [vmem:[%s3] sm:$0xff]
    %v605 = vld [vmem:[%s3 + $0x8] sm:$0xff]
    %v606 = vld [vmem:[%s4] sm:$0xff]
    %608 = vset.pattern.permute.xlu0 0
    %609 = vperm.xlu0 %608, %v606
    %v610 = vpop.permute.xlu0 %609
    %612 = vmatprep.subr.mxu0 0.0
    %613 = vmatpush1.msra.mxu0 %v572
    %614 = vmatprep.subr.mxu0 0.0
    %615 = vmatpush1.msra.mxu0 %v573
    %616 = vmatprep.subr.mxu0 0.0
    %617 = vmatpush1.msra.mxu0 %v574
    %618 = vmatprep.subr.mxu0 0.0
    %619 = vmatpush1.msra.mxu0 %v575
    %620 = vmatprep.subr.mxu0 0.0
    %621 = vmatpush1.msra.mxu0 %v576
    %622 = vmatprep.subr.mxu0 0.0
    %623 = vmatpush1.msra.mxu0 %v577
    %624 = vmatprep.subr.mxu0 0.0
    %625 = vmatpush1.msra.mxu0 %v578
    %626 = vmatprep.subr.mxu0 0.0
    %627 = vmatpush1.msra.mxu0 %v579
    %628 = vmatprep.subr.mxu0 0.0
    %629 = vmatpush1.msra.mxu0 %v580
    %630 = vmatprep.subr.mxu0 0.0
    %631 = vmatpush1.msra.mxu0 %v581
    %632 = vmatprep.subr.mxu0 0.0
    %633 = vmatpush1.msra.mxu0 %v582
    %634 = vmatprep.subr.mxu0 0.0
    %635 = vmatpush1.msra.mxu0 %v583
    %636 = vmatprep.subr.mxu0 0.0
    %637 = vmatpush1.msra.mxu0 %v584
    %638 = vmatprep.subr.mxu0 0.0
    %639 = vmatpush1.msra.mxu0 %v585
    %640 = vmatprep.subr.mxu0 0.0
    %641 = vmatpush1.msra.mxu0 %v586
    %642 = vmatprep.subr.mxu0 0.0
    %643 = vmatpush1.msra.mxu0 %v587
    %644 = vmatprep.subr.mxu0 0.0
    %645 = vmatpush1.msra.mxu0 %v588
    %646 = vmatprep.subr.mxu0 0.0
    %647 = vmatpush1.msra.mxu0 %v589
    %648 = vmatprep.subr.mxu0 0.0
    %649 = vmatpush1.msra.mxu0 %v590
    %650 = vmatprep.subr.mxu0 0.0
    %651 = vmatpush1.msra.mxu0 %v591
    %652 = vmatprep.subr.mxu0 0.0
    %653 = vmatpush1.msra.mxu0 %v592
    %654 = vmatprep.subr.mxu0 0.0
    %655 = vmatpush1.msra.mxu0 %v593
    %656 = vmatprep.subr.mxu0 0.0
    %657 = vmatpush1.msra.mxu0 %v594
    %658 = vmatprep.subr.mxu0 0.0
    %659 = vmatpush1.msra.mxu0 %v595
    %660 = vmatprep.subr.mxu0 0.0
    %661 = vmatpush1.msra.mxu0 %v596
    %662 = vmatprep.subr.mxu0 0.0
    %663 = vmatpush1.msra.mxu0 %v597
    %664 = vmatprep.subr.mxu0 0.0
    %665 = vmatpush1.msra.mxu0 %v598
    %666 = vmatprep.subr.mxu0 0.0
    %667 = vmatpush1.msra.mxu0 %v599
    %668 = vmatprep.subr.mxu0 0.0
    %669 = vmatpush1.msra.mxu0 %v600
    %670 = vmatprep.subr.mxu0 0.0
    %671 = vmatpush1.msra.mxu0 %v601
    %672 = vmatprep.subr.mxu0 0.0
    %673 = vmatpush1.msra.mxu0 %v602
    %674 = vmatprep.subr.mxu0 0.0
    %675 = vmatpush1.msra.mxu0 %v603
    %676 = vmatprep.mubr.f32.mxu0 %v605
    %677 = vmatmul.mubr.f32.gmra.mrb[0].mxu0 %v604
    %v678 = vpop.f32.mrb[0].mxu0
    %v679 = vadd.f32 %v610, %v678
    %v680 = vpop.f32.mrb[0].mxu0
    %681 = vdwg.mxu0
    %v682 = vmax.f32 %v679, -5.0
    %v683 = vmin.f32 %v682, 5.0
    %v684 = vmul.f32 %v683, 1.442695
    %v685 = vpow.pop %v684
    %v686 = vmul.f32 %v25, %v685
    %v688 = vrot.slane %v679, 4
    %v690 = vadd.f32 %v686, %v688
    %691 = vst [vmem:[#allocation2] sm:$0xf] %v24
    %692 = vst [vmem:[#allocation2 + $0x4] sm:$0xf] %v690
    %vm693 = vcmask 1043456
    %v694 = vsel %vm693, %v683, 0.0
    %v695 = vrot.slane %v694, 4
    %v696 = vadd.f32 %v694, %v695
    %v697 = vrot.slane %v696, 2
    %v698 = vadd.f32 %v696, %v697
    %v699 = vrot.slane %v698, 1
    %v700 = vadd.f32 %v698, %v699
    %701 = vst [vmem:[#allocation4] sm:$0x1] %v700
    // Predicated region
    $region22: #{tpu_custom_call.1} parent=1 // pred_check
      _
    $region23: #{tpu_custom_call.1} parent=1 // pred_check_branch
      %703 = sbr.rel (0) target = $region25
    $region24: #{tpu_custom_call.1} parent=1 // pred_region
      %s705 = ssub.s32 128, 128
      %706 = vsyncadd [#allocation3], %s705
      %s708 = sshll.u32 [#allocation2], 4
      %s709 = int_to_ptr.vmem [resolvable:$true] %s708
      %711 = dma.vmem_to_hbm [thread:$0]  %s709, 128, %s5, [#allocation3]
    $region25: #{tpu_custom_call.1} parent=1 // pred_fallthru
      _
    // Predicated region
    $region26: #{tpu_custom_call.1} parent=1 // pred_check
      _
    $region27: #{tpu_custom_call.1} parent=1 // pred_check_branch
      %713 = sbr.rel (0) target = $region29
    $region28: #{tpu_custom_call.1} parent=1 // pred_region
      %s715 = ssub.s32 16, 16
      %716 = vsyncadd [#allocation5], %s715
      %s718 = sshll.u32 [#allocation4], 4
      %s719 = int_to_ptr.vmem [resolvable:$true] %s718
      %721 = dma.vmem_to_hbm [thread:$0]  %s719, 16, %s6, [#allocation5]
    $region29: #{tpu_custom_call.1} parent=1 // pred_fallthru
      _
    // Predicated region
    $region30: #{tpu_custom_call.1} parent=1 // pred_check
      _
    $region31: #{tpu_custom_call.1} parent=1 // pred_check_branch
      %723 = sbr.rel (0) target = $region33
    $region32: #{tpu_custom_call.1} parent=1 // pred_region
      %724 = dma.done [#allocation3], 128
    $region33: #{tpu_custom_call.1} parent=1 // pred_fallthru
      _
    // Predicated region
    $region34: #{tpu_custom_call.1} parent=1 // pred_check
      _
    $region35: #{tpu_custom_call.1} parent=1 // pred_check_branch
      %726 = sbr.rel (0) target = $region37
    $region36: #{tpu_custom_call.1} parent=1 // pred_region
      %727 = dma.done [#allocation5], 16
    $region37: #{tpu_custom_call.1} parent=1 // pred_fallthru
      _
    %728 = vsyncpa [#allocation3], 1
    %729 = vsyncpa [#allocation5], 1

</llo_original>
